<compile_context>
chip_gen: v7x
topology: tpu7x:2x2x1
jax: 0.10.0
libtpu: 0.0.40
codegen_flags: <defaults>
</compile_context>

<pallas_src>
import functools
import math

import jax
import jax.numpy as jnp
from jax.experimental import pallas as pl
from jax.experimental.pallas import tpu as pltpu


def make_positional_encoding(d_model, max_len=149, dtype=jnp.float32):
    """Build the sinusoidal PE buffer exactly like the PyTorch __init__.

    For bf16 activations pass dtype=jnp.bfloat16 so the kernel stays cast-free
    and HBM traffic is halved.
    """
    position = jnp.arange(max_len, dtype=jnp.float32)[:, None]              # (max_len, 1)
    div_term = jnp.exp(
        jnp.arange(0, d_model, 2, dtype=jnp.float32) * (-math.log(10000.0) / d_model)
    )                                                                        # (d_model//2,)
    angles = position * div_term                                             # (max_len, d_model//2)
    pe = jnp.zeros((max_len, 1, d_model), dtype=jnp.float32)
    pe = pe.at[:, 0, 0::2].set(jnp.sin(angles))
    pe = pe.at[:, 0, 1::2].set(jnp.cos(angles))
    return pe.astype(dtype)


# ---------------------------------------------------------------------------
# Kernels
# ---------------------------------------------------------------------------

def _pe_add_flat_kernel(x_ref, pe_ref, o_ref, *, tile_rows, batch):
    """x/o blocks: (tile_rows, batch*d_model).  pe_ref: full (padded_seq, D)
    table, resident in VMEM across the whole grid (constant block index)."""
    i = pl.program_id(0)
    r0 = pl.multiple_of(i * tile_rows, tile_rows)
    pe_tile = pe_ref[pl.ds(r0, tile_rows), :]                  # (tS, D)
    # out[s, b*D + d] = x[s, b*D + d] + pe[s, d]  (broadcast over batch)
    o_ref[...] = x_ref[...] + jnp.tile(pe_tile, (1, batch))


def _pe_add_3d_kernel(x_ref, pe_ref, o_ref, *, tile_rows):
    """Fallback layout for d_model not a multiple of 128.
    x/o blocks: (tile_rows, B, D).  pe_ref: full resident (padded_seq, 1, D)."""
    i = pl.program_id(0)
    r0 = pl.multiple_of(i * tile_rows, tile_rows)
    pe_tile = pe_ref[pl.ds(r0, tile_rows), :, :]               # (tS, 1, D)
    o_ref[...] = x_ref[...] + pe_tile                          # broadcast over batch axis


# ---------------------------------------------------------------------------
# Wrapper
# ---------------------------------------------------------------------------

_VMEM_TILE_BUDGET = 12 * 1024 * 1024   # x-in + out, double-buffered; fits v5e's 16 MiB scoped VMEM
_SMALL_FAST_PATH_BYTES = 1 << 18       # below 256 KiB, pallas_call setup cost dwarfs the work


def positional_encoding_forward(x, pe, *, tile_rows=512, force_pallas=False):
    """x: [seq_len, batch, d_model]; returns x + pe[:seq_len] (broadcast over batch).

    Dropout has p=0.0 in the reference module, so it is the identity.
    """
    S, B, D = x.shape
    assert pe.shape[0] >= S and pe.shape[-1] == D, "pe buffer too small for input"

    nbytes = x.size * jnp.dtype(x.dtype).itemsize
    if nbytes < _SMALL_FAST_PATH_BYTES and not force_pallas:
        # Tiny input: let XLA fuse the broadcast-add; Pallas only wins at scale.
        return x + pe[:S].astype(x.dtype)

    # ---- tile size over the seq axis ---------------------------------------
    itemsize = jnp.dtype(x.dtype).itemsize
    bytes_per_row = B * D * itemsize
    # x-in tile + out tile, each double-buffered -> ~4 live tiles; stay in budget.
    max_rows = max(8, _VMEM_TILE_BUDGET // (4 * bytes_per_row))
    tS = min(tile_rows, max_rows, S)
    if tS < S:
        tS = max(8, (tS // 8) * 8)          # sublane-aligned tiles
    num_tiles = -(-S // tS)                 # ceil div
    S_pad = num_tiles * tS

    # pe kept resident in VMEM for the whole kernel (constant block index).
    # Pad its rows so the in-kernel slice of the ragged last tile stays in-bounds.
    pe2d = pe[:S, 0, :].astype(x.dtype)                        # (S, D) -- tiny buffer
    if S_pad > S:
        pe2d = jnp.pad(pe2d, ((0, S_pad - S), (0, 0)))

    compiler_params = pltpu.CompilerParams(
        dimension_semantics=("parallel",),   # independent tiles; shards over v7x's 2 TCs
    )

    if D % 128 == 0:
        # Lane-dense layout: flatten (B, D) -> B*D so every store is a full vreg.
        x2 = x.reshape(S, B * D)
        kernel = functools.partial(_pe_add_flat_kernel, tile_rows=tS, batch=B)
        out2 = pl.pallas_call(
            kernel,
            out_shape=jax.ShapeDtypeStruct((S, B * D), x.dtype),
            grid=(num_tiles,),
            in_specs=[
                pl.BlockSpec((tS, B * D), lambda i: (i, 0)),   # streamed x tiles
                pl.BlockSpec((S_pad, D), lambda i: (0, 0)),    # resident pe (DMA'd once)
            ],
            out_specs=pl.BlockSpec((tS, B * D), lambda i: (i, 0)),
            compiler_params=compiler_params,
        )(x2, pe2d)
        out = out2.reshape(S, B, D)
    else:
        # Fallback: keep (S, B, D); broadcast pe over the batch (sublane) axis.
        kernel = functools.partial(_pe_add_3d_kernel, tile_rows=tS)
        out = pl.pallas_call(
            kernel,
            out_shape=jax.ShapeDtypeStruct((S, B, D), x.dtype),
            grid=(num_tiles,),
            in_specs=[
                pl.BlockSpec((tS, B, D), lambda i: (i, 0, 0)),
                pl.BlockSpec((S_pad, 1, D), lambda i: (0, 0, 0)),
            ],
            out_specs=pl.BlockSpec((tS, B, D), lambda i: (i, 0, 0)),
            compiler_params=compiler_params,
        )(x, pe2d[:, None, :])

    return out  # dropout(p=0.0) == identity


if __name__ == "__main__":
    k_small, k_large = jax.random.split(jax.random.PRNGKey(0))

    # --- tiny shape from the module docstring (small-shape fast path) -------
    seq_len, batch, d_model = 8, 2, 32
    x_small = jax.random.normal(k_small, (seq_len, batch, d_model), dtype=jnp.float32)
    pe_small = make_positional_encoding(d_model)
    out_small = jax.block_until_ready(positional_encoding_forward(x_small, pe_small))
    ref_small = x_small + pe_small[:seq_len]
    assert out_small.shape == (seq_len, batch, d_model)
    assert jnp.allclose(out_small, ref_small, atol=1e-6), "small-shape mismatch vs reference"

    # --- shape that exercises the tiled / pipelined Pallas path -------------
    seq_len, batch, d_model = 144, 8, 128        # seq_len <= max_len = 149
    x = jax.random.normal(k_large, (seq_len, batch, d_model), dtype=jnp.float32)
    pe = make_positional_encoding(d_model)
    # tile_rows=64 -> grid of 3 seq tiles including a ragged last tile.
    out = positional_encoding_forward(x, pe, tile_rows=64, force_pallas=True)
    out = jax.block_until_ready(out)
    ref = x + pe[:seq_len]
    assert out.shape == (seq_len, batch, d_model)
    assert jnp.allclose(out, ref, atol=1e-6), "pallas-path mismatch vs reference"

    print("KERNEL_OK")
</pallas_src>

<mosaic_0001>
module attributes {stable_mosaic.version = 11 : i64} {
  func.func @_pe_add_flat_kernel(%arg0: i32, %arg1: memref<64x1024xf32, #tpu.memory_space<vmem>>, %arg2: memref<192x128xf32, #tpu.memory_space<vmem>>, %arg3: memref<64x1024xf32, #tpu.memory_space<vmem>>) attributes {dimension_semantics = [#tpu.dimension_semantics<parallel>], iteration_bounds = array<i64: 3>, scalar_prefetch = 0 : i64, scratch_operands = 0 : i64, tpu.core_type = #tpu.core_type<tc>, window_params = [{transform_indices = @transform_0, window_bounds = array<i64: 64, 1024>}, {pipeline_mode = #tpu.pipeline_mode<synchronous>, transform_indices = @transform_1, window_bounds = array<i64: 192, 128>}, {transform_indices = @transform_2, window_bounds = array<i64: 64, 1024>}]} {
    %c64_i32 = arith.constant 64 : i32
    %0 = arith.muli %arg0, %c64_i32 : i32
    %1 = tpu.assume_multiple %0, 64 : i32
    %2 = arith.index_cast %1 : i32 to index
    %c0 = arith.constant 0 : index
    %3 = vector.load %arg2[%2, %c0] : memref<192x128xf32, #tpu.memory_space<vmem>>, vector<64x128xf32>
    %c0_0 = arith.constant 0 : index
    %c0_1 = arith.constant 0 : index
    %4 = vector.load %arg1[%c0_0, %c0_1] : memref<64x1024xf32, #tpu.memory_space<vmem>>, vector<64x1024xf32>
    %5 = tpu.concatenate %3, %3, %3, %3, %3, %3, %3, %3 in 1 : vector<64x128xf32>, vector<64x128xf32>, vector<64x128xf32>, vector<64x128xf32>, vector<64x128xf32>, vector<64x128xf32>, vector<64x128xf32>, vector<64x128xf32> -> vector<64x1024xf32>
    %6 = arith.addf %4, %5 : vector<64x1024xf32>
    %c0_2 = arith.constant 0 : index
    %c0_3 = arith.constant 0 : index
    %7 = vector.load %arg3[%c0_2, %c0_3] : memref<64x1024xf32, #tpu.memory_space<vmem>>, vector<64x1024xf32>
    tpu.vector_store %arg3[%c0_2, %c0_3], %6 {strides = array<i32>} : memref<64x1024xf32, #tpu.memory_space<vmem>>, vector<64x1024xf32>,
    return
  }
  func.func @transform_0(%arg0: i32) -> (i32, i32) {
    %c0_i32 = arith.constant 0 : i32
    %c0_i32_0 = arith.constant 0 : i32
    return %arg0, %c0_i32 : i32, i32
  }
  func.func @transform_1(%arg0: i32) -> (i32, i32) {
    %c0_i32 = arith.constant 0 : i32
    %c0_i32_0 = arith.constant 0 : i32
    %c0_i32_1 = arith.constant 0 : i32
    return %c0_i32, %c0_i32_0 : i32, i32
  }
  func.func @transform_2(%arg0: i32) -> (i32, i32) {
    %c0_i32 = arith.constant 0 : i32
    %c0_i32_0 = arith.constant 0 : i32
    return %arg0, %c0_i32 : i32, i32
  }
}

</mosaic_0001>

<llo_original>
// kernel: tpu_custom_call.1
$region0: #{tpu_custom_call.1}
  #allocation0 [shape = 'u32[]', space=smem, size = 0x4, offset = 0x4, fixed_abs, tag = 'smem constant byte address 0x4 - core index']
  #allocation1 [shape = 'u32[144,128]{1,0:T(1,128)}', space=vmem, size = 0x12000, scoped, tag = 'internal scratch']
  %s0 = inlined_call_operand.hbm [shape: f32[144,1024], index: 0, kind: input, shape index: {}]
  %s1 = inlined_call_operand.hbm [shape: f32[192,128], index: 1, kind: input, shape index: {}]
  %s2 = inlined_call_operand.hbm [shape: f32[144,1024], index: 2, kind: output, shape index: {}]
  %s3 = sld [smem:[#allocation0]]
  $region49: #{tpu_custom_call.1} parent=0
    _
  %s5 = ssub.s32 1, %s3
  %s6 = scalar_select 0, %s5, %s3
  $region1: #{tpu_custom_call.1} parent=0
    #allocation2 [shape = 'u8[524288]{0}', space=vmem, size = 0x80000, scoped, tag = 'input window, operand 0']
    #allocation3 [shape = 's32[2]{0}', space=sflag, size = 0x8, scoped, tag = 'scoped memory for tpu_custom_call.1']
    #allocation4 [shape = 's32[2]{0}', space=sflag, size = 0x8, scoped, tag = 'scoped memory for tpu_custom_call.1']
    #allocation5 [shape = 'u8[98304]{0}', space=vmem, size = 0x18000, scoped, tag = 'input window, operand 1, single buffered']
    #allocation6 [shape = 's32[1]{0}', space=sflag, size = 0x4, scoped, tag = 'scoped memory for tpu_custom_call.1']
    #allocation7 [shape = 'u8[524288]{0}', space=vmem, size = 0x80000, scoped, tag = 'output window, operand 0']
    %7 = vsyncpa [#allocation3], 0
    %s8 = scalar_lea.sflag [#allocation3], 1
    %9 = vsyncpa %s8, 0
    %10 = vsyncpa [#allocation6], 0
    %11 = vsyncpa [#allocation4], 0
    %s12 = scalar_lea.sflag [#allocation4], 1
    %13 = vsyncpa %s12, 0
    loop: start=0, step=1, limit=5
    $region2: #{tpu_custom_call.1} parent=1 // loop_pre_header
      _
    $region3: #{tpu_custom_call.1} parent=1 // loop_header
      %s15 = sphi 0, %s19
      %p16 = scmp.ge.s32.totalorder %s15, 5
      %s25 = sphi 0, %s27
      %s28 = sphi 0, %s25
      %s29 = sphi 0, %s28
      %s45 = sphi 0, %s29
      %s49 = sphi 0, %s49
      %s51 = sphi 0, %s49
      %s52 = sphi 0, %s51
      %s66 = sphi 0, %s52
      %s72 = sphi 0, %s74
      %s75 = sphi 0, %s72
      %s76 = sphi 0, %s75
      %s92 = sphi 0, %s76
    $region4: #{tpu_custom_call.1} parent=1 // loop_header_branch
      %18 = sbr.rel (%p16) target = $region8
    $region5: #{tpu_custom_call.1} parent=1 // loop_body
      %s20 = ssub.s32 %s15, 1
      %s21 = ssub.s32 %s15, 2
      %s22 = sadd.s32 %s15, 1
      %s23 = ssub.s32 %s15, %s22
      %p24 = scmp.eq.s32.totalorder %s23, 0
      %s26 = sadd.s32 %s25, 1
      %s27 = scalar_select %p24, %s25, %s26
      %p30 = pneg %p24
      %p31 = scmp.eq.s32.totalorder %s15, 2
      %p32 = por %p30, %p31
      %p33 = scmp.ne.s32.totalorder %s25, %s28
      %p34 = scmp.eq.s32.totalorder %s15, 0
      %p35 = por %p33, %p34
      %p36 = scmp.ne.s32.totalorder %s25, %s28
      %p37 = scmp.eq.s32.totalorder %s20, 2
      %p38 = por %p36, %p37
      %p39 = scmp.ne.s32.totalorder %s28, %s29
      %p40 = scmp.eq.s32.totalorder %s20, 0
      %p41 = por %p39, %p40
      %p42 = scmp.ne.s32.totalorder %s28, %s29
      %p43 = scmp.eq.s32.totalorder %s21, 2
      %p44 = por %p42, %p43
      %p46 = scmp.ne.s32.totalorder %s29, %s45
      %p47 = scmp.eq.s32.totalorder %s21, 0
      %p48 = por %p46, %p47
      %s50 = sadd.s32 %s49, 1
      %p53 = scmp.eq.s32.totalorder %s15, 2
      %p54 = scmp.ne.s32.totalorder %s49, %s51
      %p55 = scmp.eq.s32.totalorder %s15, 0
      %p56 = por %p54, %p55
      %p57 = scmp.ne.s32.totalorder %s49, %s51
      %p58 = scmp.eq.s32.totalorder %s20, 2
      %p59 = por %p57, %p58
      %p60 = scmp.ne.s32.totalorder %s51, %s52
      %p61 = scmp.eq.s32.totalorder %s20, 0
      %p62 = por %p60, %p61
      %p63 = scmp.ne.s32.totalorder %s51, %s52
      %p64 = scmp.eq.s32.totalorder %s21, 2
      %p65 = por %p63, %p64
      %p67 = scmp.ne.s32.totalorder %s52, %s66
      %p68 = scmp.eq.s32.totalorder %s21, 0
      %p69 = por %p67, %p68
      %s70 = ssub.s32 %s15, %s22
      %p71 = scmp.eq.s32.totalorder %s70, 0
      %s73 = sadd.s32 %s72, 1
      %s74 = scalar_select %p71, %s72, %s73
      %p77 = pneg %p71
      %p78 = scmp.eq.s32.totalorder %s15, 2
      %p79 = por %p77, %p78
      %p80 = scmp.ne.s32.totalorder %s72, %s75
      %p81 = scmp.eq.s32.totalorder %s15, 0
      %p82 = por %p80, %p81
      %p83 = scmp.ne.s32.totalorder %s72, %s75
      %p84 = scmp.eq.s32.totalorder %s20, 2
      %p85 = por %p83, %p84
      %p86 = scmp.ne.s32.totalorder %s75, %s76
      %p87 = scmp.eq.s32.totalorder %s20, 0
      %p88 = por %p86, %p87
      %p89 = scmp.ne.s32.totalorder %s75, %s76
      %p90 = scmp.eq.s32.totalorder %s21, 2
      %p91 = por %p89, %p90
      %p93 = scmp.ne.s32.totalorder %s76, %s92
      %p94 = scmp.eq.s32.totalorder %s21, 0
      %p95 = por %p93, %p94
      %p96 = scmp.le.s32.totalorder 1, %s15
      %p97 = scmp.lt.s32.totalorder %s15, 4
      %p98 = pnand %p96, %p97
      %p99 = pneg %p98
      // Predicated region
      $region9: #{tpu_custom_call.1} parent=5 // pred_check
        _
      $region10: #{tpu_custom_call.1} parent=5 // pred_check_branch
        %101 = sbr.rel (%p98) target = $region12
      $region11: #{tpu_custom_call.1} parent=5 // pred_region
        %s102 = ssub.s32 %s15, 1
        // Predicated region
        $region13: #{tpu_custom_call.1} parent=11 // pred_check
          %p103 = pneg %p62
        $region14: #{tpu_custom_call.1} parent=11 // pred_check_branch
          %105 = sbr.rel (%p103) target = $region16
        $region15: #{tpu_custom_call.1} parent=11 // pred_region
          %s107 = ssub.s32 3072, 3072
          %108 = vsyncadd [#allocation6], %s107
          %s109 = sshll.u32 [#allocation5], 4
          %s110 = int_to_ptr.vmem [resolvable:$true] %s109
          %115 = dma.hbm_to_vmem [thread:$0]  %s1, 3072, %s110, [#allocation6], 128, 128, 8
        $region16: #{tpu_custom_call.1} parent=11 // pred_fallthru
          _
      $region12: #{tpu_custom_call.1} parent=5 // pred_fallthru
        _
      %p116 = scmp.lt.s32.totalorder %s15, 3
      // Predicated region
      $region17: #{tpu_custom_call.1} parent=5 // pred_check
        %p117 = pneg %p116
      $region18: #{tpu_custom_call.1} parent=5 // pred_check_branch
        %119 = sbr.rel (%p117) target = $region20
      $region19: #{tpu_custom_call.1} parent=5 // pred_region
        // Predicated region
        $region21: #{tpu_custom_call.1} parent=19 // pred_check
          %p120 = pneg %p35
        $region22: #{tpu_custom_call.1} parent=19 // pred_check_branch
          %122 = sbr.rel (%p120) target = $region24
        $region23: #{tpu_custom_call.1} parent=19 // pred_region
          %s123 = sand.u32 %s25, 1
          %s124 = scalar_lea.sflag [#allocation3], %s123
          %s125 = sand.u32 %s25, 1
          %s126 = smul.addr %s125, 512
          %s127 = scalar_lea.vmem [#allocation2], %s126
          %s128 = smul.u32 8, %s15
          %s129 = ssub.s32 18, %s128
          %p130 = scmp.lt.s32.totalorder %s129, 8
          %s131 = scalar_select %p130, %s129, 8
          %s132 = smul.u32 128, %s131
          %s133 = smul.u32 %s132, 8
          %s135 = ssub.s32 8192, %s133
          %136 = vsyncadd %s124, %s135
          %p137 = scmp.ne.s32.totalorder 0, %s133
          %s138 = smul.addr %s128, 8
          %s139 = smul.addr %s138, 128
          %s140 = scalar_lea.hbm %s0, %s139
          %s141 = smul.u32 64, %s131
          %s142 = sshll.u32 %s127, 4
          %s143 = int_to_ptr.vmem [resolvable:$true] %s142
          %s144 = sshll.u32 %s141, 4
          %148 = dma.hbm_to_vmem [thread:$0]  (%p137), %s140, %s144, %s143, %s124, 1024, 1024, 64
        $region24: #{tpu_custom_call.1} parent=19 // pred_fallthru
          _
      $region20: #{tpu_custom_call.1} parent=5 // pred_fallthru
        _
      %p149 = scmp.le.s32.totalorder 1, %s15
      %p150 = scmp.lt.s32.totalorder %s15, 4
      %p151 = pnand %p149, %p150
      %p152 = pneg %p151
      // Predicated region
      $region25: #{tpu_custom_call.1} parent=5 // pred_check
        _
      $region26: #{tpu_custom_call.1} parent=5 // pred_check_branch
        %154 = sbr.rel (%p151) target = $region28
      $region27: #{tpu_custom_call.1} parent=5 // pred_region
        %s155 = ssub.s32 %s15, 1
        %s156 = sand.u32 %s28, 1
        %s157 = scalar_lea.sflag [#allocation3], %s156
        %s158 = sand.u32 %s28, 1
        %s159 = smul.addr %s158, 512
        %s160 = scalar_lea.vmem [#allocation2], %s159
        // Predicated region
        $region29: #{tpu_custom_call.1} parent=27 // pred_check
          %p161 = pneg %p41
        $region30: #{tpu_custom_call.1} parent=27 // pred_check_branch
          %163 = sbr.rel (%p161) target = $region32
        $region31: #{tpu_custom_call.1} parent=27 // pred_region
          %164 = dma.done %s157, 8192
        $region32: #{tpu_custom_call.1} parent=27 // pred_fallthru
          _
        // Predicated region
        $region33: #{tpu_custom_call.1} parent=27 // pred_check
          %p165 = pneg %p62
        $region34: #{tpu_custom_call.1} parent=27 // pred_check_branch
          %167 = sbr.rel (%p165) target = $region36
        $region35: #{tpu_custom_call.1} parent=27 // pred_region
          %168 = dma.done [#allocation6], 3072
        $region36: #{tpu_custom_call.1} parent=27 // pred_fallthru
          _
        %s169 = sand.u32 %s28, 1
        %s170 = scalar_lea.sflag [#allocation3], %s169
        %s171 = sand.u32 %s28, 1
        %s172 = smul.addr %s171, 512
        %s173 = scalar_lea.vmem [#allocation2], %s172
        %p174 = pneg %p41
        %p175 = pneg %p38
        %p176 = pneg %p62
        %p177 = pneg %p59
        %p178 = pneg %p88
        %p179 = pneg %p85
        %s180 = sand.u32 %s75, 1
        %s181 = scalar_lea.sflag [#allocation4], %s180
        %s182 = sand.u32 %s75, 1
        %s183 = smul.addr %s182, 512
        %s184 = scalar_lea.vmem [#allocation7], %s183
        %s185 = smul.u32 8, %s20
        %s186 = ssub.s32 18, %s185
        %p187 = scmp.lt.s32.totalorder %s186, 8
        %s188 = scalar_select %p187, %s186, 8
        %s189 = smul.u32 128, %s188
        %s190 = smul.u32 %s189, 8
        %s191 = smul.u32 8, %s20
        %s192 = ssub.s32 18, %s191
        %p193 = scmp.lt.s32.totalorder %s192, 8
        %s194 = scalar_select %p193, %s192, 8
        %s195 = smul.u32 128, %s194
        %s196 = smul.u32 %s195, 8
        %s197 = smul.u32 %s20, 64
        %s198 = scalar_lea.vmem [#allocation5], %s197
        %v199 = vld [vmem:[%s198] sm:$0xff]
        %v200 = vld [vmem:[%s198 + $0x8] sm:$0xff]
        %v201 = vld [vmem:[%s198 + $0x10] sm:$0xff]
        %v202 = vld [vmem:[%s198 + $0x18] sm:$0xff]
        %v203 = vld [vmem:[%s198 + $0x20] sm:$0xff]
        %v204 = vld [vmem:[%s198 + $0x28] sm:$0xff]
        %v205 = vld [vmem:[%s198 + $0x30] sm:$0xff]
        %v206 = vld [vmem:[%s198 + $0x38] sm:$0xff]
        %v207 = vld [vmem:[%s160] sm:$0xff]
        %v208 = vld [vmem:[%s160 + $0x8] sm:$0xff]
        %v209 = vld [vmem:[%s160 + $0x10] sm:$0xff]
        %v210 = vld [vmem:[%s160 + $0x18] sm:$0xff]
        %v211 = vld [vmem:[%s160 + $0x20] sm:$0xff]
        %v212 = vld [vmem:[%s160 + $0x28] sm:$0xff]
        %v213 = vld [vmem:[%s160 + $0x30] sm:$0xff]
        %v214 = vld [vmem:[%s160 + $0x38] sm:$0xff]
        %v215 = vld [vmem:[%s160 + $0x40] sm:$0xff]
        %v216 = vld [vmem:[%s160 + $0x48] sm:$0xff]
        %v217 = vld [vmem:[%s160 + $0x50] sm:$0xff]
        %v218 = vld [vmem:[%s160 + $0x58] sm:$0xff]
        %v219 = vld [vmem:[%s160 + $0x60] sm:$0xff]
        %v220 = vld [vmem:[%s160 + $0x68] sm:$0xff]
        %v221 = vld [vmem:[%s160 + $0x70] sm:$0xff]
        %v222 = vld [vmem:[%s160 + $0x78] sm:$0xff]
        %v223 = vld [vmem:[%s160 + $0x80] sm:$0xff]
        %v224 = vld [vmem:[%s160 + $0x88] sm:$0xff]
        %v225 = vld [vmem:[%s160 + $0x90] sm:$0xff]
        %v226 = vld [vmem:[%s160 + $0x98] sm:$0xff]
        %v227 = vld [vmem:[%s160 + $0xa0] sm:$0xff]
        %v228 = vld [vmem:[%s160 + $0xa8] sm:$0xff]
        %v229 = vld [vmem:[%s160 + $0xb0] sm:$0xff]
        %v230 = vld [vmem:[%s160 + $0xb8] sm:$0xff]
        %v231 = vld [vmem:[%s160 + $0xc0] sm:$0xff]
        %v232 = vld [vmem:[%s160 + $0xc8] sm:$0xff]
        %v233 = vld [vmem:[%s160 + $0xd0] sm:$0xff]
        %v234 = vld [vmem:[%s160 + $0xd8] sm:$0xff]
        %v235 = vld [vmem:[%s160 + $0xe0] sm:$0xff]
        %v236 = vld [vmem:[%s160 + $0xe8] sm:$0xff]
        %v237 = vld [vmem:[%s160 + $0xf0] sm:$0xff]
        %v238 = vld [vmem:[%s160 + $0xf8] sm:$0xff]
        %v239 = vld [vmem:[%s160 + $0x100] sm:$0xff]
        %v240 = vld [vmem:[%s160 + $0x108] sm:$0xff]
        %v241 = vld [vmem:[%s160 + $0x110] sm:$0xff]
        %v242 = vld [vmem:[%s160 + $0x118] sm:$0xff]
        %v243 = vld [vmem:[%s160 + $0x120] sm:$0xff]
        %v244 = vld [vmem:[%s160 + $0x128] sm:$0xff]
        %v245 = vld [vmem:[%s160 + $0x130] sm:$0xff]
        %v246 = vld [vmem:[%s160 + $0x138] sm:$0xff]
        %v247 = vld [vmem:[%s160 + $0x140] sm:$0xff]
        %v248 = vld [vmem:[%s160 + $0x148] sm:$0xff]
        %v249 = vld [vmem:[%s160 + $0x150] sm:$0xff]
        %v250 = vld [vmem:[%s160 + $0x158] sm:$0xff]
        %v251 = vld [vmem:[%s160 + $0x160] sm:$0xff]
        %v252 = vld [vmem:[%s160 + $0x168] sm:$0xff]
        %v253 = vld [vmem:[%s160 + $0x170] sm:$0xff]
        %v254 = vld [vmem:[%s160 + $0x178] sm:$0xff]
        %v255 = vld [vmem:[%s160 + $0x180] sm:$0xff]
        %v256 = vld [vmem:[%s160 + $0x188] sm:$0xff]
        %v257 = vld [vmem:[%s160 + $0x190] sm:$0xff]
        %v258 = vld [vmem:[%s160 + $0x198] sm:$0xff]
        %v259 = vld [vmem:[%s160 + $0x1a0] sm:$0xff]
        %v260 = vld [vmem:[%s160 + $0x1a8] sm:$0xff]
        %v261 = vld [vmem:[%s160 + $0x1b0] sm:$0xff]
        %v262 = vld [vmem:[%s160 + $0x1b8] sm:$0xff]
        %v263 = vld [vmem:[%s160 + $0x1c0] sm:$0xff]
        %v264 = vld [vmem:[%s160 + $0x1c8] sm:$0xff]
        %v265 = vld [vmem:[%s160 + $0x1d0] sm:$0xff]
        %v266 = vld [vmem:[%s160 + $0x1d8] sm:$0xff]
        %v267 = vld [vmem:[%s160 + $0x1e0] sm:$0xff]
        %v268 = vld [vmem:[%s160 + $0x1e8] sm:$0xff]
        %v269 = vld [vmem:[%s160 + $0x1f0] sm:$0xff]
        %v270 = vld [vmem:[%s160 + $0x1f8] sm:$0xff]
        %v271 = vadd.f32 %v207, %v199
        %v272 = vadd.f32 %v208, %v199
        %v273 = vadd.f32 %v209, %v199
        %v274 = vadd.f32 %v210, %v199
        %v275 = vadd.f32 %v211, %v199
        %v276 = vadd.f32 %v212, %v199
        %v277 = vadd.f32 %v213, %v199
        %v278 = vadd.f32 %v214, %v199
        %v279 = vadd.f32 %v215, %v200
        %v280 = vadd.f32 %v216, %v200
        %v281 = vadd.f32 %v217, %v200
        %v282 = vadd.f32 %v218, %v200
        %v283 = vadd.f32 %v219, %v200
        %v284 = vadd.f32 %v220, %v200
        %v285 = vadd.f32 %v221, %v200
        %v286 = vadd.f32 %v222, %v200
        %v287 = vadd.f32 %v223, %v201
        %v288 = vadd.f32 %v224, %v201
        %v289 = vadd.f32 %v225, %v201
        %v290 = vadd.f32 %v226, %v201
        %v291 = vadd.f32 %v227, %v201
        %v292 = vadd.f32 %v228, %v201
        %v293 = vadd.f32 %v229, %v201
        %v294 = vadd.f32 %v230, %v201
        %v295 = vadd.f32 %v231, %v202
        %v296 = vadd.f32 %v232, %v202
        %v297 = vadd.f32 %v233, %v202
        %v298 = vadd.f32 %v234, %v202
        %v299 = vadd.f32 %v235, %v202
        %v300 = vadd.f32 %v236, %v202
        %v301 = vadd.f32 %v237, %v202
        %v302 = vadd.f32 %v238, %v202
        %v303 = vadd.f32 %v239, %v203
        %v304 = vadd.f32 %v240, %v203
        %v305 = vadd.f32 %v241, %v203
        %v306 = vadd.f32 %v242, %v203
        %v307 = vadd.f32 %v243, %v203
        %v308 = vadd.f32 %v244, %v203
        %v309 = vadd.f32 %v245, %v203
        %v310 = vadd.f32 %v246, %v203
        %v311 = vadd.f32 %v247, %v204
        %v312 = vadd.f32 %v248, %v204
        %v313 = vadd.f32 %v249, %v204
        %v314 = vadd.f32 %v250, %v204
        %v315 = vadd.f32 %v251, %v204
        %v316 = vadd.f32 %v252, %v204
        %v317 = vadd.f32 %v253, %v204
        %v318 = vadd.f32 %v254, %v204
        %v319 = vadd.f32 %v255, %v205
        %v320 = vadd.f32 %v256, %v205
        %v321 = vadd.f32 %v257, %v205
        %v322 = vadd.f32 %v258, %v205
        %v323 = vadd.f32 %v259, %v205
        %v324 = vadd.f32 %v260, %v205
        %v325 = vadd.f32 %v261, %v205
        %v326 = vadd.f32 %v262, %v205
        %v327 = vadd.f32 %v263, %v206
        %v328 = vadd.f32 %v264, %v206
        %v329 = vadd.f32 %v265, %v206
        %v330 = vadd.f32 %v266, %v206
        %v331 = vadd.f32 %v267, %v206
        %v332 = vadd.f32 %v268, %v206
        %v333 = vadd.f32 %v269, %v206
        %v334 = vadd.f32 %v270, %v206
        %335 = vst [vmem:[%s184] sm:$0xff] %v271
        %336 = vst [vmem:[%s184 + $0x8] sm:$0xff] %v272
        %337 = vst [vmem:[%s184 + $0x10] sm:$0xff] %v273
        %338 = vst [vmem:[%s184 + $0x18] sm:$0xff] %v274
        %339 = vst [vmem:[%s184 + $0x20] sm:$0xff] %v275
        %340 = vst [vmem:[%s184 + $0x28] sm:$0xff] %v276
        %341 = vst [vmem:[%s184 + $0x30] sm:$0xff] %v277
        %342 = vst [vmem:[%s184 + $0x38] sm:$0xff] %v278
        %343 = vst [vmem:[%s184 + $0x40] sm:$0xff] %v279
        %344 = vst [vmem:[%s184 + $0x48] sm:$0xff] %v280
        %345 = vst [vmem:[%s184 + $0x50] sm:$0xff] %v281
        %346 = vst [vmem:[%s184 + $0x58] sm:$0xff] %v282
        %347 = vst [vmem:[%s184 + $0x60] sm:$0xff] %v283
        %348 = vst [vmem:[%s184 + $0x68] sm:$0xff] %v284
        %349 = vst [vmem:[%s184 + $0x70] sm:$0xff] %v285
        %350 = vst [vmem:[%s184 + $0x78] sm:$0xff] %v286
        %351 = vst [vmem:[%s184 + $0x80] sm:$0xff] %v287
        %352 = vst [vmem:[%s184 + $0x88] sm:$0xff] %v288
        %353 = vst [vmem:[%s184 + $0x90] sm:$0xff] %v289
        %354 = vst [vmem:[%s184 + $0x98] sm:$0xff] %v290
        %355 = vst [vmem:[%s184 + $0xa0] sm:$0xff] %v291
        %356 = vst [vmem:[%s184 + $0xa8] sm:$0xff] %v292
        %357 = vst [vmem:[%s184 + $0xb0] sm:$0xff] %v293
        %358 = vst [vmem:[%s184 + $0xb8] sm:$0xff] %v294
        %359 = vst [vmem:[%s184 + $0xc0] sm:$0xff] %v295
        %360 = vst [vmem:[%s184 + $0xc8] sm:$0xff] %v296
        %361 = vst [vmem:[%s184 + $0xd0] sm:$0xff] %v297
        %362 = vst [vmem:[%s184 + $0xd8] sm:$0xff] %v298
        %363 = vst [vmem:[%s184 + $0xe0] sm:$0xff] %v299
        %364 = vst [vmem:[%s184 + $0xe8] sm:$0xff] %v300
        %365 = vst [vmem:[%s184 + $0xf0] sm:$0xff] %v301
        %366 = vst [vmem:[%s184 + $0xf8] sm:$0xff] %v302
        %367 = vst [vmem:[%s184 + $0x100] sm:$0xff] %v303
        %368 = vst [vmem:[%s184 + $0x108] sm:$0xff] %v304
        %369 = vst [vmem:[%s184 + $0x110] sm:$0xff] %v305
        %370 = vst [vmem:[%s184 + $0x118] sm:$0xff] %v306
        %371 = vst [vmem:[%s184 + $0x120] sm:$0xff] %v307
        %372 = vst [vmem:[%s184 + $0x128] sm:$0xff] %v308
        %373 = vst [vmem:[%s184 + $0x130] sm:$0xff] %v309
        %374 = vst [vmem:[%s184 + $0x138] sm:$0xff] %v310
        %375 = vst [vmem:[%s184 + $0x140] sm:$0xff] %v311
        %376 = vst [vmem:[%s184 + $0x148] sm:$0xff] %v312
        %377 = vst [vmem:[%s184 + $0x150] sm:$0xff] %v313
        %378 = vst [vmem:[%s184 + $0x158] sm:$0xff] %v314
        %379 = vst [vmem:[%s184 + $0x160] sm:$0xff] %v315
        %380 = vst [vmem:[%s184 + $0x168] sm:$0xff] %v316
        %381 = vst [vmem:[%s184 + $0x170] sm:$0xff] %v317
        %382 = vst [vmem:[%s184 + $0x178] sm:$0xff] %v318
        %383 = vst [vmem:[%s184 + $0x180] sm:$0xff] %v319
        %384 = vst [vmem:[%s184 + $0x188] sm:$0xff] %v320
        %385 = vst [vmem:[%s184 + $0x190] sm:$0xff] %v321
        %386 = vst [vmem:[%s184 + $0x198] sm:$0xff] %v322
        %387 = vst [vmem:[%s184 + $0x1a0] sm:$0xff] %v323
        %388 = vst [vmem:[%s184 + $0x1a8] sm:$0xff] %v324
        %389 = vst [vmem:[%s184 + $0x1b0] sm:$0xff] %v325
        %390 = vst [vmem:[%s184 + $0x1b8] sm:$0xff] %v326
        %391 = vst [vmem:[%s184 + $0x1c0] sm:$0xff] %v327
        %392 = vst [vmem:[%s184 + $0x1c8] sm:$0xff] %v328
        %393 = vst [vmem:[%s184 + $0x1d0] sm:$0xff] %v329
        %394 = vst [vmem:[%s184 + $0x1d8] sm:$0xff] %v330
        %395 = vst [vmem:[%s184 + $0x1e0] sm:$0xff] %v331
        %396 = vst [vmem:[%s184 + $0x1e8] sm:$0xff] %v332
        %397 = vst [vmem:[%s184 + $0x1f0] sm:$0xff] %v333
        %398 = vst [vmem:[%s184 + $0x1f8] sm:$0xff] %v334
        %s399 = sand.u32 %s75, 1
        %s400 = scalar_lea.sflag [#allocation4], %s399
        %s401 = sand.u32 %s75, 1
        %s402 = smul.addr %s401, 512
        %s403 = scalar_lea.vmem [#allocation7], %s402
        // Predicated region
        $region37: #{tpu_custom_call.1} parent=27 // pred_check
          %p404 = pneg %p85
        $region38: #{tpu_custom_call.1} parent=27 // pred_check_branch
          %406 = sbr.rel (%p404) target = $region40
        $region39: #{tpu_custom_call.1} parent=27 // pred_region
          %s407 = smul.u32 8, %s20
          %s408 = ssub.s32 18, %s407
          %p409 = scmp.lt.s32.totalorder %s408, 8
          %s410 = scalar_select %p409, %s408, 8
          %s411 = smul.u32 128, %s410
          %s412 = smul.u32 %s411, 8
          %s414 = ssub.s32 8192, %s412
          %415 = vsyncadd %s400, %s414
          %p416 = scmp.ne.s32.totalorder 0, %s412
          %s417 = smul.addr %s407, 8
          %s418 = smul.addr %s417, 128
          %s419 = scalar_lea.hbm %s2, %s418
          %s420 = smul.u32 64, %s410
          %s421 = sshll.u32 %s403, 4
          %s422 = int_to_ptr.vmem [resolvable:$true] %s421
          %s423 = sshll.u32 %s420, 4
          %427 = dma.vmem_to_hbm [thread:$0]  (%p416), %s422, %s423, %s419, %s400, 1024, 1024, 64
        $region40: #{tpu_custom_call.1} parent=27 // pred_fallthru
          _
      $region28: #{tpu_custom_call.1} parent=5 // pred_fallthru
        _
      %p428 = scmp.le.s32.totalorder 2, %s15
      // Predicated region
      $region41: #{tpu_custom_call.1} parent=5 // pred_check
        %p429 = pneg %p428
      $region42: #{tpu_custom_call.1} parent=5 // pred_check_branch
        %431 = sbr.rel (%p429) target = $region44
      $region43: #{tpu_custom_call.1} parent=5 // pred_region
        %s432 = ssub.s32 %s15, 2
        // Predicated region
        $region45: #{tpu_custom_call.1} parent=43 // pred_check
          %p433 = pneg %p91
        $region46: #{tpu_custom_call.1} parent=43 // pred_check_branch
          %435 = sbr.rel (%p433) target = $region48
        $region47: #{tpu_custom_call.1} parent=43 // pred_region
          %s436 = sand.u32 %s76, 1
          %s437 = scalar_lea.sflag [#allocation4], %s436
          %s438 = sand.u32 %s76, 1
          %s439 = smul.addr %s438, 512
          %s440 = scalar_lea.vmem [#allocation7], %s439
          %441 = dma.done %s437, 8192
        $region48: #{tpu_custom_call.1} parent=43 // pred_fallthru
          _
      $region44: #{tpu_custom_call.1} parent=5 // pred_fallthru
        _
    $region6: #{tpu_custom_call.1} parent=1 // loop_footer
      %s19 = sadd.s32 1, %s15
    $region7: #{tpu_custom_call.1} parent=1 // loop_footer_branch
      %14 = sbr.rel target = $region3
    $region8: #{tpu_custom_call.1} parent=1 // loop_exit
      _
    %442 = vsyncpa [#allocation3], 1
    %s443 = scalar_lea.sflag [#allocation3], 1
    %444 = vsyncpa %s443, 1
    %445 = vsyncpa [#allocation6], 1
    %446 = vsyncpa [#allocation4], 1
    %s447 = scalar_lea.sflag [#allocation4], 1
    %448 = vsyncpa %s447, 1

</llo_original>
